<compile_context>
chip_gen: v5e
topology: v5e:2x2
jax: 0.10.0
libtpu: 0.0.40
codegen_flags: <defaults>
</compile_context>

<pallas_src>
import functools

import jax
import jax.numpy as jnp
from jax.experimental import pallas as pl
from jax.experimental.pallas import tpu as pltpu


# ----------------------------------------------------------------------------
# helpers
# ----------------------------------------------------------------------------
@functools.lru_cache(maxsize=None)
def _vmem_limit_bytes():
    """Per-arch scoped VMEM limit: ~3/4 of physical, capped at 100 MiB."""
    try:
        info = pltpu.get_tpu_info()
        cap = int(getattr(info, "vmem_capacity_bytes", 0) or 0)
        if cap > 0:
            return int(min(cap * 3 // 4, 100 << 20))
    except Exception:
        pass
    return 64 << 20  # safe fallback on any generation


def _compiler_params(sem):
    return pltpu.CompilerParams(dimension_semantics=sem,
                                vmem_limit_bytes=_vmem_limit_bytes())


_MAX_PIXEL_TILE = 2048


def _pixel_tiles(P):
    """(tile, n_tiles) along the pixel/lane axis.  A ragged last tile is safe for the
    1x1-conv kernels (each output column depends only on its own input column)."""
    if P <= _MAX_PIXEL_TILE:
        return P, 1
    for t in range(_MAX_PIXEL_TILE - _MAX_PIXEL_TILE % 128, 127, -128):
        if P % t == 0:
            return t, P // t
    return _MAX_PIXEL_TILE, (P + _MAX_PIXEL_TILE - 1) // _MAX_PIXEL_TILE


# ----------------------------------------------------------------------------
# K1: fused 1x1x1 conv + folded BatchNorm + optional ReLU  (channels-first in/out)
# ----------------------------------------------------------------------------
def _pw_conv_bn_act_kernel(x_ref, w_ref, s_ref, b_ref, o_ref, *, apply_relu):
    # x: (C_in, TP) pixels-on-lanes; w: (C_out, C_in); s/b: (C_out, 1) f32
    y = jnp.dot(w_ref[...], x_ref[...], preferred_element_type=jnp.float32)   # (C_out, TP)
    y = y * s_ref[...] + b_ref[...]
    if apply_relu:
        y = jnp.maximum(y, 0.0)
    o_ref[...] = y.astype(o_ref.dtype)


def _pointwise_conv_bn_act(x_cf, w, scale, bias, *, apply_relu, out_dtype):
    """x_cf: (B, C_in, P) channels-first -> (B, C_out, P) channels-first (lane-dense)."""
    B, C_in, P = x_cf.shape
    C_out = w.shape[0]
    tp, nt = _pixel_tiles(P)
    return pl.pallas_call(
        functools.partial(_pw_conv_bn_act_kernel, apply_relu=apply_relu),
        out_shape=jax.ShapeDtypeStruct((B, C_out, P), out_dtype),
        grid=(B, nt),
        in_specs=[
            pl.BlockSpec((None, C_in, tp), lambda b, i: (b, 0, i)),
            pl.BlockSpec((C_out, C_in), lambda b, i: (0, 0)),
            pl.BlockSpec((C_out, 1), lambda b, i: (0, 0)),
            pl.BlockSpec((C_out, 1), lambda b, i: (0, 0)),
        ],
        out_specs=pl.BlockSpec((None, C_out, tp), lambda b, i: (b, 0, i)),
        compiler_params=_compiler_params(("parallel", "parallel")),
    )(x_cf, w.astype(x_cf.dtype),
      scale.reshape(C_out, 1).astype(jnp.float32),
      bias.reshape(C_out, 1).astype(jnp.float32))


# ----------------------------------------------------------------------------
# K2: fused 3x3x3 conv (pad 1) + folded BatchNorm + ReLU
#     channels-first, pixels-on-lanes; 27 taps folded into one K=27*C matmul / slab;
#     depth windowed (TD "cur" slabs + single-slab prev/next halo), depth stride in-kernel.
# ----------------------------------------------------------------------------
def _shift_lanes(plane, off, C, HW):
    """shifted[c, p] = plane[c, p + off] if 0 <= p + off < HW else 0 (static off)."""
    if off == 0:
        return plane
    z = jnp.zeros((C, abs(off)), plane.dtype)
    if off > 0:
        return jnp.concatenate([plane[:, off:], z], axis=1)
    return jnp.concatenate([z, plane[:, :HW + off]], axis=1)


def _conv3x3x3_kernel(cur_ref, prev_ref, nxt_ref, w_ref, s_ref, b_ref, o_ref,
                      *, TD, stride, D, H, W, C):
    HW = H * W
    t = pl.program_id(1)
    # Column (W-axis) validity masks on the flattened H*W lane axis; the H-axis
    # validity is handled exactly by the zero fill in _shift_lanes.
    ww = jax.lax.broadcasted_iota(jnp.int32, (1, HW), 1) % W
    wmask = {-1: ww >= 1, 0: None, 1: ww <= W - 2}
    w_cat = w_ref[...]                                   # (C, 27*C)
    scale = s_ref[...]
    bias = b_ref[...]
    for j in range(TD):                                  # output depth slab within the tile
        planes = []
        for kd in range(3):
            local = j + kd - 1
            if local == -1:                              # halo below the tile
                slab = prev_ref[:, 0, :]
                dvalid = t > 0                           # global depth s*TD*t - 1 >= 0
            elif local == TD:                            # halo above the tile
                slab = nxt_ref[:, 0, :]
                dvalid = (stride * (TD * t + TD - 1) + 1) < D
            else:
                slab = cur_ref[:, local, :]
                dvalid = None
            for kh in range(3):
                for kw in range(3):
                    off = (kh - 1) * W + (kw - 1)
                    sh = _shift_lanes(slab, off, C, HW)
                    m = wmask[kw - 1]
                    if dvalid is not None:
                        m = dvalid if m is None else jnp.logical_and(m, dvalid)
                    planes.append(sh if m is None else jnp.where(m, sh, 0))
        xcat = jnp.concatenate(planes, axis=0)                              # (27*C, HW)
        acc = jnp.dot(w_cat, xcat, preferred_element_type=jnp.float32)      # (C, HW)
        y = jnp.maximum(acc * scale + bias, 0.0)
        o_ref[:, j, :] = y.astype(o_ref.dtype)


def _conv3x3x3_bn_relu(h_cf, w2, scale, bias, *, D, H, W, stride, out_dtype):
    """h_cf: (B, C, D, H*W) -> (B, C, Do, H*W); depth stride applied, H/W at full res."""
    B, C, _, HW = h_cf.shape
    Do = (D - 1) // stride + 1
    if stride == 1:
        TD = next(td for td in (8, 4, 2, 1) if D % td == 0)   # sublane-aligned depth tile
    else:
        TD = 1
    n_t = Do // TD
    # (C_out, C_in, 3,3,3) -> (C_out, 27*C_in), tap-major (kd,kh,kw), channel minor
    w_cat = jnp.transpose(w2, (0, 2, 3, 4, 1)).reshape(C, 27 * C).astype(h_cf.dtype)

    def cur_map(b, t):
        return (b, 0, t if TD > 1 else stride * t, 0)

    def prev_map(b, t):
        return (b, 0, jnp.maximum(stride * TD * t - 1, 0), 0)

    def nxt_map(b, t):
        return (b, 0, jnp.minimum(stride * (TD * t + TD - 1) + 1, D - 1), 0)

    kernel = functools.partial(_conv3x3x3_kernel, TD=TD, stride=stride,
                               D=D, H=H, W=W, C=C)
    # TODO(synk): for very large H*W planes the per-slab (27*C, H*W) working set should
    # additionally be tiled along the lane axis (with halo masks); not needed here.
    return pl.pallas_call(
        kernel,
        out_shape=jax.ShapeDtypeStruct((B, C, Do, HW), out_dtype),
        grid=(B, n_t),
        in_specs=[
            pl.BlockSpec((None, C, TD, HW), cur_map),     # current depth window
            pl.BlockSpec((None, C, 1, HW), prev_map),     # lower halo slab (clamped)
            pl.BlockSpec((None, C, 1, HW), nxt_map),      # upper halo slab (clamped)
            pl.BlockSpec((C, 27 * C), lambda b, t: (0, 0)),
            pl.BlockSpec((C, 1), lambda b, t: (0, 0)),
            pl.BlockSpec((C, 1), lambda b, t: (0, 0)),
        ],
        out_specs=pl.BlockSpec((None, C, TD, HW), lambda b, t: (b, 0, t, 0)),
        compiler_params=_compiler_params(("parallel", "parallel")),
    )(h_cf, h_cf, h_cf, w_cat,
      scale.reshape(C, 1).astype(jnp.float32),
      bias.reshape(C, 1).astype(jnp.float32))


# ----------------------------------------------------------------------------
# K3: fused conv3 + BN + (identity 1x1x1 conv + BN | plain identity) + add + ReLU
# ----------------------------------------------------------------------------
def _tail_map_kernel(h_ref, x_ref, w3_ref, s3_ref, b3_ref,
                     wi_ref, si_ref, bi_ref, o_ref, *, final_relu):
    main = jnp.dot(w3_ref[...], h_ref[...], preferred_element_type=jnp.float32)
    main = main * s3_ref[...] + b3_ref[...]
    ident = jnp.dot(wi_ref[...], x_ref[...], preferred_element_type=jnp.float32)
    ident = ident * si_ref[...] + bi_ref[...]
    y = main + ident
    if final_relu:
        y = jnp.maximum(y, 0.0)
    o_ref[...] = y.astype(o_ref.dtype)


def _tail_nomap_kernel(h_ref, x_ref, w3_ref, s3_ref, b3_ref, o_ref, *, final_relu):
    main = jnp.dot(w3_ref[...], h_ref[...], preferred_element_type=jnp.float32)
    y = main * s3_ref[...] + b3_ref[...] + x_ref[...].astype(jnp.float32)
    if final_relu:
        y = jnp.maximum(y, 0.0)
    o_ref[...] = y.astype(o_ref.dtype)


def _bottleneck_tail(h_cf, x_cf, w3, s3, b3, wi=None, si=None, bi=None,
                     *, final_relu, out_dtype):
    """h_cf: (B, C_mid, P), x_cf: (B, C_in, P) -> (B, C_out, P); all pixels-on-lanes."""
    B, C_mid, P = h_cf.shape
    C_in = x_cf.shape[1]
    C_out = w3.shape[0]
    tp, nt = _pixel_tiles(P)
    col = lambda v: v.reshape(-1, 1).astype(jnp.float32)

    if wi is not None:
        kernel = functools.partial(_tail_map_kernel, final_relu=final_relu)
        in_specs = [
            pl.BlockSpec((None, C_mid, tp), lambda b, i: (b, 0, i)),
            pl.BlockSpec((None, C_in, tp), lambda b, i: (b, 0, i)),
            pl.BlockSpec((C_out, C_mid), lambda b, i: (0, 0)),
            pl.BlockSpec((C_out, 1), lambda b, i: (0, 0)),
            pl.BlockSpec((C_out, 1), lambda b, i: (0, 0)),
            pl.BlockSpec((C_out, C_in), lambda b, i: (0, 0)),
            pl.BlockSpec((C_out, 1), lambda b, i: (0, 0)),
            pl.BlockSpec((C_out, 1), lambda b, i: (0, 0)),
        ]
        args = (h_cf, x_cf, w3.astype(h_cf.dtype), col(s3), col(b3),
                wi.astype(h_cf.dtype), col(si), col(bi))
    else:
        kernel = functools.partial(_tail_nomap_kernel, final_relu=final_relu)
        in_specs = [
            pl.BlockSpec((None, C_mid, tp), lambda b, i: (b, 0, i)),
            pl.BlockSpec((None, C_out, tp), lambda b, i: (b, 0, i)),
            pl.BlockSpec((C_out, C_mid), lambda b, i: (0, 0)),
            pl.BlockSpec((C_out, 1), lambda b, i: (0, 0)),
            pl.BlockSpec((C_out, 1), lambda b, i: (0, 0)),
        ]
        args = (h_cf, x_cf, w3.astype(h_cf.dtype), col(s3), col(b3))

    return pl.pallas_call(
        kernel,
        out_shape=jax.ShapeDtypeStruct((B, C_out, P), out_dtype),
        grid=(B, nt),
        in_specs=in_specs,
        out_specs=pl.BlockSpec((None, C_out, tp), lambda b, i: (b, 0, i)),
        compiler_params=_compiler_params(("parallel", "parallel")),
    )(*args)


# ----------------------------------------------------------------------------
# JAX port of the module
# ----------------------------------------------------------------------------
class ResBottleneck:
    """3-D residual bottleneck (inference).  norm='BATCH', leaky=False supported."""

    def __init__(self, in_channels, out_channels, stride=1, leaky=False,
                 norm='BATCH', *, key, compute_dtype=jnp.bfloat16, eps=1e-5):
        if norm != 'BATCH':
            # TODO(synk): INSTANCE/GROUP norm variants (and GROUP's norm->act->conv
            # ordering in ConvNorm.group_forward) are not implemented.
            raise NotImplementedError("Only norm='BATCH' is implemented.")
        if leaky:
            # TODO(synk): PReLU (learnable negative slope) not implemented; ReLU only.
            raise NotImplementedError("Only leaky=False (ReLU) is implemented.")
        self.norm_type = norm
        self.in_channels = in_channels
        self.out_channels = out_channels
        self.stride = stride
        self.mid = in_channels // 4
        self.need_map = in_channels != out_channels or stride != 1
        self.compute_dtype = compute_dtype   # MXU/HBM dtype; accumulation stays f32

        ks = jax.random.split(key, 8)

        def conv_w(k, co, ci, ksz):
            fan_in = ci * ksz ** 3
            return (jax.random.normal(k, (co, ci, ksz, ksz, ksz), jnp.float32)
                    / jnp.sqrt(fan_in))

        def bn_fold(k, c):
            # TODO(synk): BatchNorm uses inference-mode running statistics folded
            # into scale/bias; training-mode batch statistics are not computed.
            k1, k2, k3, k4 = jax.random.split(k, 4)
            gamma = jax.random.uniform(k1, (c,), jnp.float32, 0.5, 1.5)
            beta = 0.1 * jax.random.normal(k2, (c,), jnp.float32)
            mean = 0.1 * jax.random.normal(k3, (c,), jnp.float32)
            var = jax.random.uniform(k4, (c,), jnp.float32, 0.5, 1.5)
            scale = gamma / jnp.sqrt(var + eps)
            bias = beta - mean * scale
            return scale, bias

        mid = self.mid
        self.w1 = conv_w(ks[0], mid, in_channels, 1)
        self.s1, self.b1 = bn_fold(ks[1], mid)
        self.w2 = conv_w(ks[2], mid, mid, 3)
        self.s2, self.b2 = bn_fold(ks[3], mid)
        self.w3 = conv_w(ks[4], out_channels, mid, 1)
        self.s3, self.b3 = bn_fold(ks[5], out_channels)
        if self.need_map:
            self.wi = conv_w(ks[6], out_channels, in_channels, 1)
            self.si, self.bi = bn_fold(ks[7], out_channels)

    def forward(self, x):
        B, C_in, D, H, W = x.shape
        s = self.stride
        mid, C_out = self.mid, self.out_channels
        P = D * H * W
        cd = self.compute_dtype or x.dtype

        x_cf = x.reshape(B, C_in, P)            # free reshape, NCDHW-native
        x_c = x_cf.astype(cd)

        # conv1 (1x1x1) + BN + ReLU, fused; channels-first / pixels-on-lanes out
        h1 = _pointwise_conv_bn_act(x_c, self.w1.reshape(mid, C_in),
                                    self.s1, self.b1, apply_relu=True,
                                    out_dtype=cd)                        # (B, mid, P)

        # conv2 (3x3x3, pad 1) + BN + ReLU, fused; depth stride handled in-kernel
        h2 = _conv3x3x3_bn_relu(h1.reshape(B, mid, D, H * W), self.w2,
                                self.s2, self.b2, D=D, H=H, W=W, stride=s,
                                out_dtype=cd)                            # (B, mid, Do, H*W)

        Do, Ho, Wo = (D - 1) // s + 1, (H - 1) // s + 1, (W - 1) // s + 1
        if s != 1:
            # TODO(synk): H/W stride is computed at full resolution in-kernel and
            # subsampled here (exact for k=3/pad=1); folding it into the kernel lanes
            # would remove the remaining s^2 over-compute.
            h2 = h2.reshape(B, mid, Do, H, W)[:, :, :, ::s, ::s]
        Po = Do * Ho * Wo
        h2 = h2.reshape(B, mid, Po)

        final_relu = self.norm_type != 'GROUP'
        if self.need_map:
            xi = x_c if s == 1 else (
                x[:, :, ::s, ::s, ::s].reshape(B, C_in, Po).astype(cd))
            out = _bottleneck_tail(h2, xi, self.w3.reshape(C_out, mid),
                                   self.s3, self.b3,
                                   self.wi.reshape(C_out, C_in), self.si, self.bi,
                                   final_relu=final_relu, out_dtype=x.dtype)
        else:
            out = _bottleneck_tail(h2, x_c, self.w3.reshape(C_out, mid),
                                   self.s3, self.b3,
                                   final_relu=final_relu, out_dtype=x.dtype)
        return out.reshape(B, C_out, Do, Ho, Wo)

    __call__ = forward


# ----------------------------------------------------------------------------
# Pure-JAX reference for the correctness check
# ----------------------------------------------------------------------------
def _ref_resbottleneck(x, m):
    def bn(y, scale, bias):
        return y * scale[None, :, None, None, None] + bias[None, :, None, None, None]

    def pconv(y, w):
        return jnp.einsum('bcdhw,oc->bodhw', y, w.reshape(w.shape[0], w.shape[1]))

    h = jax.nn.relu(bn(pconv(x, m.w1), m.s1, m.b1))
    h = jax.lax.conv_general_dilated(
        h, m.w2, window_strides=(m.stride,) * 3, padding=((1, 1),) * 3,
        dimension_numbers=('NCDHW', 'OIDHW', 'NCDHW'))
    h = jax.nn.relu(bn(h, m.s2, m.b2))
    out = bn(pconv(h, m.w3), m.s3, m.b3)
    if m.need_map:
        s = m.stride
        ident = bn(pconv(x[:, :, ::s, ::s, ::s], m.wi), m.si, m.bi)
    else:
        ident = x
    return jax.nn.relu(out + ident)


if __name__ == "__main__":
    key = jax.random.PRNGKey(0)
    kx, kp1, kp2, kp3 = jax.random.split(key, 4)

    B, D, H, W = 2, 8, 8, 8
    x = jax.random.normal(kx, (B, 32, D, H, W), jnp.float32)

    # config 1: in != out -> identity-mapping conv path, stride 1 (default bf16 compute)
    block1 = ResBottleneck(32, 64, stride=1, leaky=False, norm='BATCH', key=kp1)
    y1 = jax.block_until_ready(block1(x))
    r1 = _ref_resbottleneck(x, block1)
    assert y1.shape == (B, 64, D, H, W)
    assert jnp.allclose(y1, r1, rtol=3e-2, atol=3e-2), float(jnp.max(jnp.abs(y1 - r1)))

    # config 2: in == out, stride 1 -> plain residual add (default bf16 compute)
    block2 = ResBottleneck(32, 32, stride=1, key=kp2)
    y2 = jax.block_until_ready(block2(x))
    r2 = _ref_resbottleneck(x, block2)
    assert jnp.allclose(y2, r2, rtol=3e-2, atol=3e-2), float(jnp.max(jnp.abs(y2 - r2)))

    # config 3: stride 2 downsampling with identity mapping (f32 compute path)
    block3 = ResBottleneck(32, 64, stride=2, key=kp3, compute_dtype=jnp.float32)
    y3 = jax.block_until_ready(block3(x))
    r3 = _ref_resbottleneck(x, block3)
    assert y3.shape == (B, 64, 4, 4, 4)
    assert jnp.allclose(y3, r3, rtol=3e-2, atol=3e-2), float(jnp.max(jnp.abs(y3 - r3)))

    print("KERNEL_OK")
</pallas_src>

<mosaic_0001>
module attributes {stable_mosaic.version = 11 : i64} {
  func.func @_pw_conv_bn_act_kernel(%arg0: i32, %arg1: i32, %arg2: memref<1x32x512xbf16, #tpu.memory_space<vmem>>, %arg3: memref<8x32xbf16, #tpu.memory_space<vmem>>, %arg4: memref<8x1xf32, #tpu.memory_space<vmem>>, %arg5: memref<8x1xf32, #tpu.memory_space<vmem>>, %arg6: memref<1x8x512xbf16, #tpu.memory_space<vmem>>) attributes {dimension_semantics = [#tpu.dimension_semantics<parallel>, #tpu.dimension_semantics<parallel>], iteration_bounds = array<i64: 2, 1>, scalar_prefetch = 0 : i64, scratch_operands = 0 : i64, tpu.core_type = #tpu.core_type<tc>, window_params = [{transform_indices = @transform_0, window_bounds = array<i64: 1, 32, 512>}, {pipeline_mode = #tpu.pipeline_mode<synchronous>, transform_indices = @transform_1, window_bounds = array<i64: 8, 32>}, {pipeline_mode = #tpu.pipeline_mode<synchronous>, transform_indices = @transform_2, window_bounds = array<i64: 8, 1>}, {pipeline_mode = #tpu.pipeline_mode<synchronous>, transform_indices = @transform_3, window_bounds = array<i64: 8, 1>}, {transform_indices = @transform_4, window_bounds = array<i64: 1, 8, 512>}]} {
    %c0 = arith.constant 0 : index
    %c0_0 = arith.constant 0 : index
    %0 = vector.load %arg3[%c0, %c0_0] : memref<8x32xbf16, #tpu.memory_space<vmem>>, vector<8x32xbf16>
    %c0_1 = arith.constant 0 : index
    %c0_2 = arith.constant 0 : index
    %c0_3 = arith.constant 0 : index
    %1 = vector.load %arg2[%c0_1, %c0_2, %c0_3] : memref<1x32x512xbf16, #tpu.memory_space<vmem>>, vector<1x32x512xbf16>
    %2 = vector.shape_cast %1 : vector<1x32x512xbf16> to vector<32x512xbf16>
    %cst = arith.constant dense<0.000000e+00> : vector<8x512xf32>
    %3 = tpu.matmul %0, %2, %cst {dimension_numbers = #tpu.dot_dimension_numbers<[1], [0], [0], [1], [0, 0, 1, 1], [], []>} : vector<8x32xbf16>, vector<32x512xbf16>, vector<8x512xf32> -> vector<8x512xf32>
    %c0_4 = arith.constant 0 : index
    %c0_5 = arith.constant 0 : index
    %4 = vector.load %arg4[%c0_4, %c0_5] : memref<8x1xf32, #tpu.memory_space<vmem>>, vector<8x1xf32>
    %5 = vector.broadcast %4 : vector<8x1xf32> to vector<8x512xf32>
    %6 = arith.mulf %3, %5 : vector<8x512xf32>
    %c0_6 = arith.constant 0 : index
    %c0_7 = arith.constant 0 : index
    %7 = vector.load %arg5[%c0_6, %c0_7] : memref<8x1xf32, #tpu.memory_space<vmem>>, vector<8x1xf32>
    %8 = vector.broadcast %7 : vector<8x1xf32> to vector<8x512xf32>
    %9 = arith.addf %6, %8 : vector<8x512xf32>
    %cst_8 = arith.constant 0.000000e+00 : f32
    %10 = vector.broadcast %cst_8 : f32 to vector<8x512xf32>
    %11 = arith.maximumf %9, %10 : vector<8x512xf32>
    %12 = arith.truncf %11 : vector<8x512xf32> to vector<8x512xbf16>
    %c0_9 = arith.constant 0 : index
    %c0_10 = arith.constant 0 : index
    %c0_11 = arith.constant 0 : index
    %13 = vector.load %arg6[%c0_9, %c0_10, %c0_11] : memref<1x8x512xbf16, #tpu.memory_space<vmem>>, vector<1x8x512xbf16>
    %14 = vector.shape_cast %13 : vector<1x8x512xbf16> to vector<8x512xbf16>
    %15 = vector.shape_cast %12 : vector<8x512xbf16> to vector<1x8x512xbf16>
    tpu.vector_store %arg6[%c0_9, %c0_10, %c0_11], %15 {strides = array<i32>} : memref<1x8x512xbf16, #tpu.memory_space<vmem>>, vector<1x8x512xbf16>,
    return
  }
  func.func @transform_0(%arg0: i32, %arg1: i32) -> (i32, i32, i32) {
    %c0_i32 = arith.constant 0 : i32
    %c0_i32_0 = arith.constant 0 : i32
    return %arg0, %c0_i32, %arg1 : i32, i32, i32
  }
  func.func @transform_1(%arg0: i32, %arg1: i32) -> (i32, i32) {
    %c0_i32 = arith.constant 0 : i32
    %c0_i32_0 = arith.constant 0 : i32
    %c0_i32_1 = arith.constant 0 : i32
    return %c0_i32, %c0_i32_0 : i32, i32
  }
  func.func @transform_2(%arg0: i32, %arg1: i32) -> (i32, i32) {
    %c0_i32 = arith.constant 0 : i32
    %c0_i32_0 = arith.constant 0 : i32
    %c0_i32_1 = arith.constant 0 : i32
    return %c0_i32, %c0_i32_0 : i32, i32
  }
  func.func @transform_3(%arg0: i32, %arg1: i32) -> (i32, i32) {
    %c0_i32 = arith.constant 0 : i32
    %c0_i32_0 = arith.constant 0 : i32
    %c0_i32_1 = arith.constant 0 : i32
    return %c0_i32, %c0_i32_0 : i32, i32
  }
  func.func @transform_4(%arg0: i32, %arg1: i32) -> (i32, i32, i32) {
    %c0_i32 = arith.constant 0 : i32
    %c0_i32_0 = arith.constant 0 : i32
    return %arg0, %c0_i32, %arg1 : i32, i32, i32
  }
}

</mosaic_0001>

<llo_original>
// kernel: tpu_custom_call.1
$region0: #{tpu_custom_call.1}
  #allocation0 [shape = 'u32[]', space=smem, size = 0x4, offset = 0x4, fixed_abs, tag = 'smem constant byte address 0x4 - core index']
  #allocation1 [shape = 'u32[72,128]{1,0:T(1,128)}', space=vmem, size = 0x9000, scoped, tag = 'internal scratch']
  %s0 = inlined_call_operand.hbm [shape: bf16[2,32,512], index: 0, kind: input, shape index: {}]
  %s1 = inlined_call_operand.vmem [shape: bf16[8,32], index: 1, kind: input, shape index: {}]
  %s2 = inlined_call_operand.vmem [shape: f32[8,1], index: 2, kind: input, shape index: {}]
  %s3 = inlined_call_operand.vmem [shape: f32[8,1], index: 3, kind: input, shape index: {}]
  %s4 = inlined_call_operand.hbm [shape: bf16[2,8,512], index: 4, kind: output, shape index: {}]
  %s5 = sld [smem:[#allocation0]]
  $region53: #{tpu_custom_call.1} parent=0
    _
  %s7 = ssub.s32 1, %s5
  %s8 = scalar_select 0, %s7, %s5
  $region1: #{tpu_custom_call.1} parent=0
    #allocation2 [shape = 'u8[65536]{0}', space=vmem, size = 0x10000, scoped, tag = 'input window, operand 0']
    #allocation3 [shape = 's32[2]{0}', space=sflag, size = 0x8, scoped, tag = 'scoped memory for tpu_custom_call.1']
    #allocation4 [shape = 's32[2]{0}', space=sflag, size = 0x8, scoped, tag = 'scoped memory for tpu_custom_call.1']
    #allocation5 [shape = 'u8[16384]{0}', space=vmem, size = 0x4000, scoped, tag = 'output window, operand 0']
    %9 = vsyncpa [#allocation3], 0
    %s10 = scalar_lea.sflag [#allocation3], 1
    %11 = vsyncpa %s10, 0
    %12 = vsyncpa [#allocation4], 0
    %s13 = scalar_lea.sflag [#allocation4], 1
    %14 = vsyncpa %s13, 0
    loop: start=0, step=1, limit=4
    $region2: #{tpu_custom_call.1} parent=1 // loop_pre_header
      _
    $region3: #{tpu_custom_call.1} parent=1 // loop_header
      %s16 = sphi 0, %s20
      %p17 = scmp.ge.s32.totalorder %s16, 4
      %s23 = sphi 0, %s35
      %s24 = sphi 0, %s31
      %s25 = sphi 0, %s23
      %s26 = sphi 0, %s24
      %s27 = sphi 0, %s25
      %s28 = sphi 0, %s26
      %s40 = sphi 0, %s42
      %s43 = sphi 0, %s40
      %s44 = sphi 0, %s43
      %s60 = sphi 0, %s44
      %s64 = sphi 0, %s64
      %s66 = sphi 0, %s64
      %s67 = sphi 0, %s66
      %s81 = sphi 0, %s67
      %s85 = sphi 0, %s85
      %s87 = sphi 0, %s85
      %s88 = sphi 0, %s87
      %s102 = sphi 0, %s88
      %s106 = sphi 0, %s106
      %s108 = sphi 0, %s106
      %s109 = sphi 0, %s108
      %s123 = sphi 0, %s109
      %s131 = sphi 0, %s133
      %s134 = sphi 0, %s131
      %s135 = sphi 0, %s134
      %s151 = sphi 0, %s135
    $region4: #{tpu_custom_call.1} parent=1 // loop_header_branch
      %19 = sbr.rel (%p17) target = $region8
    $region5: #{tpu_custom_call.1} parent=1 // loop_body
      %s21 = ssub.s32 %s16, 1
      %s22 = ssub.s32 %s16, 2
      %s29 = sadd.s32 1, %s24
      %p30 = scmp.ge.s32.totalorder %s29, 1
      %s31 = scalar_select %p30, 0, %s29
      %s32 = sadd.s32 1, %s23
      %s33 = scalar_select %p30, %s32, %s23
      %p34 = scmp.ge.s32.totalorder %s33, 2
      %s35 = scalar_select %p34, 0, %s33
      %s36 = ssub.s32 %s23, %s35
      %s37 = ssub.s32 %s24, %s31
      %s38 = sor.u32 %s36, %s37
      %p39 = scmp.eq.s32.totalorder %s38, 0
      %s41 = sadd.s32 %s40, 1
      %s42 = scalar_select %p39, %s40, %s41
      %p45 = pneg %p39
      %p46 = scmp.eq.s32.totalorder %s16, 1
      %p47 = por %p45, %p46
      %p48 = scmp.ne.s32.totalorder %s40, %s43
      %p49 = scmp.eq.s32.totalorder %s16, 0
      %p50 = por %p48, %p49
      %p51 = scmp.ne.s32.totalorder %s40, %s43
      %p52 = scmp.eq.s32.totalorder %s21, 1
      %p53 = por %p51, %p52
      %p54 = scmp.ne.s32.totalorder %s43, %s44
      %p55 = scmp.eq.s32.totalorder %s21, 0
      %p56 = por %p54, %p55
      %p57 = scmp.ne.s32.totalorder %s43, %s44
      %p58 = scmp.eq.s32.totalorder %s22, 1
      %p59 = por %p57, %p58
      %p61 = scmp.ne.s32.totalorder %s44, %s60
      %p62 = scmp.eq.s32.totalorder %s22, 0
      %p63 = por %p61, %p62
      %s65 = sadd.s32 %s64, 1
      %p68 = scmp.eq.s32.totalorder %s16, 1
      %p69 = scmp.ne.s32.totalorder %s64, %s66
      %p70 = scmp.eq.s32.totalorder %s16, 0
      %p71 = por %p69, %p70
      %p72 = scmp.ne.s32.totalorder %s64, %s66
      %p73 = scmp.eq.s32.totalorder %s21, 1
      %p74 = por %p72, %p73
      %p75 = scmp.ne.s32.totalorder %s66, %s67
      %p76 = scmp.eq.s32.totalorder %s21, 0
      %p77 = por %p75, %p76
      %p78 = scmp.ne.s32.totalorder %s66, %s67
      %p79 = scmp.eq.s32.totalorder %s22, 1
      %p80 = por %p78, %p79
      %p82 = scmp.ne.s32.totalorder %s67, %s81
      %p83 = scmp.eq.s32.totalorder %s22, 0
      %p84 = por %p82, %p83
      %s86 = sadd.s32 %s85, 1
      %p89 = scmp.eq.s32.totalorder %s16, 1
      %p90 = scmp.ne.s32.totalorder %s85, %s87
      %p91 = scmp.eq.s32.totalorder %s16, 0
      %p92 = por %p90, %p91
      %p93 = scmp.ne.s32.totalorder %s85, %s87
      %p94 = scmp.eq.s32.totalorder %s21, 1
      %p95 = por %p93, %p94
      %p96 = scmp.ne.s32.totalorder %s87, %s88
      %p97 = scmp.eq.s32.totalorder %s21, 0
      %p98 = por %p96, %p97
      %p99 = scmp.ne.s32.totalorder %s87, %s88
      %p100 = scmp.eq.s32.totalorder %s22, 1
      %p101 = por %p99, %p100
      %p103 = scmp.ne.s32.totalorder %s88, %s102
      %p104 = scmp.eq.s32.totalorder %s22, 0
      %p105 = por %p103, %p104
      %s107 = sadd.s32 %s106, 1
      %p110 = scmp.eq.s32.totalorder %s16, 1
      %p111 = scmp.ne.s32.totalorder %s106, %s108
      %p112 = scmp.eq.s32.totalorder %s16, 0
      %p113 = por %p111, %p112
      %p114 = scmp.ne.s32.totalorder %s106, %s108
      %p115 = scmp.eq.s32.totalorder %s21, 1
      %p116 = por %p114, %p115
      %p117 = scmp.ne.s32.totalorder %s108, %s109
      %p118 = scmp.eq.s32.totalorder %s21, 0
      %p119 = por %p117, %p118
      %p120 = scmp.ne.s32.totalorder %s108, %s109
      %p121 = scmp.eq.s32.totalorder %s22, 1
      %p122 = por %p120, %p121
      %p124 = scmp.ne.s32.totalorder %s109, %s123
      %p125 = scmp.eq.s32.totalorder %s22, 0
      %p126 = por %p124, %p125
      %s127 = ssub.s32 %s23, %s35
      %s128 = ssub.s32 %s24, %s31
      %s129 = sor.u32 %s127, %s128
      %p130 = scmp.eq.s32.totalorder %s129, 0
      %s132 = sadd.s32 %s131, 1
      %s133 = scalar_select %p130, %s131, %s132
      %p136 = pneg %p130
      %p137 = scmp.eq.s32.totalorder %s16, 1
      %p138 = por %p136, %p137
      %p139 = scmp.ne.s32.totalorder %s131, %s134
      %p140 = scmp.eq.s32.totalorder %s16, 0
      %p141 = por %p139, %p140
      %p142 = scmp.ne.s32.totalorder %s131, %s134
      %p143 = scmp.eq.s32.totalorder %s21, 1
      %p144 = por %p142, %p143
      %p145 = scmp.ne.s32.totalorder %s134, %s135
      %p146 = scmp.eq.s32.totalorder %s21, 0
      %p147 = por %p145, %p146
      %p148 = scmp.ne.s32.totalorder %s134, %s135
      %p149 = scmp.eq.s32.totalorder %s22, 1
      %p150 = por %p148, %p149
      %p152 = scmp.ne.s32.totalorder %s135, %s151
      %p153 = scmp.eq.s32.totalorder %s22, 0
      %p154 = por %p152, %p153
      %p155 = scmp.le.s32.totalorder 1, %s16
      %p156 = scmp.lt.s32.totalorder %s16, 3
      %p157 = pnand %p155, %p156
      %p158 = pneg %p157
      // Predicated region
      $region9: #{tpu_custom_call.1} parent=5 // pred_check
        _
      $region10: #{tpu_custom_call.1} parent=5 // pred_check_branch
        %160 = sbr.rel (%p157) target = $region12
      $region11: #{tpu_custom_call.1} parent=5 // pred_region
        %s161 = ssub.s32 %s16, 1
        // Predicated region
        $region13: #{tpu_custom_call.1} parent=11 // pred_check
          %p162 = pneg %p77
        $region14: #{tpu_custom_call.1} parent=11 // pred_check_branch
          %164 = sbr.rel (%p162) target = $region16
        $region15: #{tpu_custom_call.1} parent=11 // pred_region
          _
        $region16: #{tpu_custom_call.1} parent=11 // pred_fallthru
          _
        // Predicated region
        $region17: #{tpu_custom_call.1} parent=11 // pred_check
          %p165 = pneg %p98
        $region18: #{tpu_custom_call.1} parent=11 // pred_check_branch
          %167 = sbr.rel (%p165) target = $region20
        $region19: #{tpu_custom_call.1} parent=11 // pred_region
          _
        $region20: #{tpu_custom_call.1} parent=11 // pred_fallthru
          _
        // Predicated region
        $region21: #{tpu_custom_call.1} parent=11 // pred_check
          %p168 = pneg %p119
        $region22: #{tpu_custom_call.1} parent=11 // pred_check_branch
          %170 = sbr.rel (%p168) target = $region24
        $region23: #{tpu_custom_call.1} parent=11 // pred_region
          _
        $region24: #{tpu_custom_call.1} parent=11 // pred_fallthru
          _
      $region12: #{tpu_custom_call.1} parent=5 // pred_fallthru
        _
      %p171 = scmp.lt.s32.totalorder %s16, 2
      // Predicated region
      $region25: #{tpu_custom_call.1} parent=5 // pred_check
        %p172 = pneg %p171
      $region26: #{tpu_custom_call.1} parent=5 // pred_check_branch
        %174 = sbr.rel (%p172) target = $region28
      $region27: #{tpu_custom_call.1} parent=5 // pred_region
        // Predicated region
        $region29: #{tpu_custom_call.1} parent=27 // pred_check
          %p175 = pneg %p50
        $region30: #{tpu_custom_call.1} parent=27 // pred_check_branch
          %177 = sbr.rel (%p175) target = $region32
        $region31: #{tpu_custom_call.1} parent=27 // pred_region
          %s178 = sand.u32 %s40, 1
          %s179 = scalar_lea.sflag [#allocation3], %s178
          %s180 = sand.u32 %s40, 1
          %s181 = smul.addr %s180, 64
          %s182 = scalar_lea.vmem [#allocation2], %s181
          %s183 = smul.u32 4, %s24
          %185 = vsyncadd %s179, 0
          %s186 = smul.addr %s23, 16
          %s187 = sadd.s32 %s183, %s186
          %s188 = smul.addr %s187, 4
          %s189 = scalar_lea.hbm %s0, %s188
          %s190 = sshll.u32 %s189, 4
          %s191 = int_to_ptr.hbm [resolvable:$true] %s190
          %s192 = sshll.u32 %s182, 4
          %s193 = int_to_ptr.vmem [resolvable:$true] %s192
          %198 = dma.hbm_to_vmem [thread:$0]  %s191, 1024, %s193, %s179, 256, 256, 16
        $region32: #{tpu_custom_call.1} parent=27 // pred_fallthru
          _
      $region28: #{tpu_custom_call.1} parent=5 // pred_fallthru
        _
      %p199 = scmp.le.s32.totalorder 1, %s16
      %p200 = scmp.lt.s32.totalorder %s16, 3
      %p201 = pnand %p199, %p200
      %p202 = pneg %p201
      // Predicated region
      $region33: #{tpu_custom_call.1} parent=5 // pred_check
        _
      $region34: #{tpu_custom_call.1} parent=5 // pred_check_branch
        %204 = sbr.rel (%p201) target = $region36
      $region35: #{tpu_custom_call.1} parent=5 // pred_region
        %s205 = ssub.s32 %s16, 1
        %s206 = sand.u32 %s43, 1
        %s207 = scalar_lea.sflag [#allocation3], %s206
        %s208 = sand.u32 %s43, 1
        %s209 = smul.addr %s208, 64
        %s210 = scalar_lea.vmem [#allocation2], %s209
        // Predicated region
        $region37: #{tpu_custom_call.1} parent=35 // pred_check
          %p211 = pneg %p56
        $region38: #{tpu_custom_call.1} parent=35 // pred_check_branch
          %213 = sbr.rel (%p211) target = $region40
        $region39: #{tpu_custom_call.1} parent=35 // pred_region
          %215 = dma.done %s207, 1024
        $region40: #{tpu_custom_call.1} parent=35 // pred_fallthru
          _
        %s216 = sand.u32 %s43, 1
        %s217 = scalar_lea.sflag [#allocation3], %s216
        %s218 = sand.u32 %s43, 1
        %s219 = smul.addr %s218, 64
        %s220 = scalar_lea.vmem [#allocation2], %s219
        %p221 = pneg %p56
        %p222 = pneg %p53
        %p223 = pneg %p77
        %p224 = pneg %p74
        %p225 = pneg %p98
        %p226 = pneg %p95
        %p227 = pneg %p119
        %p228 = pneg %p116
        %p229 = pneg %p147
        %p230 = pneg %p144
        %s231 = sand.u32 %s134, 1
        %s232 = scalar_lea.sflag [#allocation4], %s231
        %s233 = sand.u32 %s134, 1
        %s234 = smul.addr %s233, 16
        %s235 = scalar_lea.vmem [#allocation5], %s234
        %s236 = smul.u32 4, %s26
        %s237 = smul.u32 4, %s26
        %v239 = vld [vmem:[%s1] sm:$0xf]
        %v240 = vld [vmem:[%s210] sm:$0xff]
        %v241 = vld [vmem:[%s210 + $0x8] sm:$0xff]
        %v242 = vld [vmem:[%s210 + $0x10] sm:$0xff]
        %v243 = vld [vmem:[%s210 + $0x18] sm:$0xff]
        %v244 = vld [vmem:[%s210 + $0x20] sm:$0xff]
        %v245 = vld [vmem:[%s210 + $0x28] sm:$0xff]
        %v246 = vld [vmem:[%s210 + $0x30] sm:$0xff]
        %v247 = vld [vmem:[%s210 + $0x38] sm:$0xff]
        %v256 = vunpack.c.l.b16 %v240
        %v257 = vunpack.c.h.b16 %v240
        %v258 = vunpack.c.l.b16 %v241
        %v259 = vunpack.c.h.b16 %v241
        %v260 = vunpack.c.l.b16 %v242
        %v261 = vunpack.c.h.b16 %v242
        %v262 = vunpack.c.l.b16 %v243
        %v263 = vunpack.c.h.b16 %v243
        %v264 = vunpack.c.l.b16 %v244
        %v265 = vunpack.c.h.b16 %v244
        %v266 = vunpack.c.l.b16 %v245
        %v267 = vunpack.c.h.b16 %v245
        %v268 = vunpack.c.l.b16 %v246
        %v269 = vunpack.c.h.b16 %v246
        %v270 = vunpack.c.l.b16 %v247
        %v271 = vunpack.c.h.b16 %v247
        %v272 = vpack.c.b16 %v260, %v256
        %v273 = vpack.c.b16 %v261, %v257
        %v274 = vpack.c.b16 %v262, %v258
        %v275 = vpack.c.b16 %v263, %v259
        %v276 = vpack.c.b16 %v268, %v264
        %v277 = vpack.c.b16 %v269, %v265
        %v278 = vpack.c.b16 %v270, %v266
        %v279 = vpack.c.b16 %v271, %v267
        %vm288 = vcmask 261120
        %v290 = vsel %vm288, %v239, 0
        %292 = vmatpush.bf16.msra.mxu0 0
        %293 = vmatpush.bf16.msra.mxu0 0
        %294 = vmatpush.bf16.msra.mxu0 0
        %295 = vmatpush.bf16.msra.mxu0 0
        %296 = vmatpush.bf16.msra.mxu0 0
        %297 = vmatpush.bf16.msra.mxu0 0
        %298 = vmatpush.bf16.msra.mxu0 %v276
        %299 = vmatpush.bf16.msra.mxu0 %v272
        %300 = vmatmul.bf16.gmra.mxu0 %v290
        %v301 = vpop.f32.mrf.mxu0
        %v302 = vadd.f32 0.0, %v301
        %v303 = vpop.f32.mrf.mxu0
        %304 = vdwg.mxu0
        %305 = vmatpush.bf16.msra.mxu0 0
        %306 = vmatpush.bf16.msra.mxu0 0
        %307 = vmatpush.bf16.msra.mxu0 0
        %308 = vmatpush.bf16.msra.mxu0 0
        %309 = vmatpush.bf16.msra.mxu0 0
        %310 = vmatpush.bf16.msra.mxu0 0
        %311 = vmatpush.bf16.msra.mxu0 %v277
        %312 = vmatpush.bf16.msra.mxu0 %v273
        %313 = vmatmul.bf16.gmra.mxu0 %v290
        %v314 = vpop.f32.mrf.mxu0
        %v315 = vadd.f32 0.0, %v314
        %v316 = vpop.f32.mrf.mxu0
        %317 = vdwg.mxu0
        %318 = vmatpush.bf16.msra.mxu0 0
        %319 = vmatpush.bf16.msra.mxu0 0
        %320 = vmatpush.bf16.msra.mxu0 0
        %321 = vmatpush.bf16.msra.mxu0 0
        %322 = vmatpush.bf16.msra.mxu0 0
        %323 = vmatpush.bf16.msra.mxu0 0
        %324 = vmatpush.bf16.msra.mxu0 %v278
        %325 = vmatpush.bf16.msra.mxu0 %v274
        %326 = vmatmul.bf16.gmra.mxu0 %v290
        %v327 = vpop.f32.mrf.mxu0
        %v328 = vadd.f32 0.0, %v327
        %v329 = vpop.f32.mrf.mxu0
        %330 = vdwg.mxu0
        %331 = vmatpush.bf16.msra.mxu0 0
        %332 = vmatpush.bf16.msra.mxu0 0
        %333 = vmatpush.bf16.msra.mxu0 0
        %334 = vmatpush.bf16.msra.mxu0 0
        %335 = vmatpush.bf16.msra.mxu0 0
        %336 = vmatpush.bf16.msra.mxu0 0
        %337 = vmatpush.bf16.msra.mxu0 %v279
        %338 = vmatpush.bf16.msra.mxu0 %v275
        %339 = vmatmul.bf16.gmra.mxu0 %v290
        %v340 = vpop.f32.mrf.mxu0
        %v341 = vadd.f32 0.0, %v340
        %v342 = vpop.f32.mrf.mxu0
        %343 = vdwg.mxu0
        %v344 = vld [vmem:[%s2] sm:$0xff]
        %346 = vset.pattern.permute.xlu0 0
        %347 = vperm.xlu0 %346, %v344
        %v348 = vpop.permute.xlu0 %347
        %v350 = vmul.f32 %v302, %v348
        %v351 = vmul.f32 %v315, %v348
        %v352 = vmul.f32 %v328, %v348
        %v353 = vmul.f32 %v341, %v348
        %v354 = vld [vmem:[%s3] sm:$0xff]
        %356 = vset.pattern.permute.xlu0 0
        %357 = vperm.xlu0 %356, %v354
        %v358 = vpop.permute.xlu0 %357
        %v360 = vadd.f32 %v350, %v358
        %v361 = vadd.f32 %v351, %v358
        %v362 = vadd.f32 %v352, %v358
        %v363 = vadd.f32 %v353, %v358
        %v364 = vmax.f32 %v360, 0.0
        %v365 = vmax.f32 %v361, 0.0
        %v366 = vmax.f32 %v362, 0.0
        %v367 = vmax.f32 %v363, 0.0
        %v368 = vpack.c.bf16 %v365, %v364
        %v369 = vpack.c.bf16 %v367, %v366
        %370 = vst [vmem:[%s235] sm:$0xff] %v368
        %371 = vst [vmem:[%s235 + $0x8] sm:$0xff] %v369
        %s372 = sand.u32 %s134, 1
        %s373 = scalar_lea.sflag [#allocation4], %s372
        %s374 = sand.u32 %s134, 1
        %s375 = smul.addr %s374, 16
        %s376 = scalar_lea.vmem [#allocation5], %s375
        // Predicated region
        $region41: #{tpu_custom_call.1} parent=35 // pred_check
          %p377 = pneg %p144
        $region42: #{tpu_custom_call.1} parent=35 // pred_check_branch
          %379 = sbr.rel (%p377) target = $region44
        $region43: #{tpu_custom_call.1} parent=35 // pred_region
          %s380 = smul.u32 4, %s26
          %382 = vsyncadd %s373, 0
          %s383 = smul.addr %s25, 4
          %s384 = sadd.s32 %s380, %s383
          %s385 = smul.addr %s384, 4
          %s386 = scalar_lea.hbm %s4, %s385
          %s388 = sshll.u32 %s376, 4
          %s389 = int_to_ptr.vmem [resolvable:$true] %s388
          %s390 = sshll.u32 %s386, 4
          %s391 = int_to_ptr.hbm [resolvable:$true] %s390
          %393 = dma.vmem_to_hbm [thread:$0]  %s389, 256, %s391, %s373
        $region44: #{tpu_custom_call.1} parent=35 // pred_fallthru
          _
      $region36: #{tpu_custom_call.1} parent=5 // pred_fallthru
        _
      %p394 = scmp.le.s32.totalorder 2, %s16
      // Predicated region
      $region45: #{tpu_custom_call.1} parent=5 // pred_check
        %p395 = pneg %p394
      $region46: #{tpu_custom_call.1} parent=5 // pred_check_branch
        %397 = sbr.rel (%p395) target = $region48
      $region47: #{tpu_custom_call.1} parent=5 // pred_region
        %s398 = ssub.s32 %s16, 2
        // Predicated region
        $region49: #{tpu_custom_call.1} parent=47 // pred_check
          %p399 = pneg %p150
        $region50: #{tpu_custom_call.1} parent=47 // pred_check_branch
          %401 = sbr.rel (%p399) target = $region52
        $region51: #{tpu_custom_call.1} parent=47 // pred_region
          %s402 = sand.u32 %s135, 1
          %s403 = scalar_lea.sflag [#allocation4], %s402
          %s404 = sand.u32 %s135, 1
          %s405 = smul.addr %s404, 16
          %s406 = scalar_lea.vmem [#allocation5], %s405
          %408 = dma.done %s403, 256
        $region52: #{tpu_custom_call.1} parent=47 // pred_fallthru
          _
      $region48: #{tpu_custom_call.1} parent=5 // pred_fallthru
        _
    $region6: #{tpu_custom_call.1} parent=1 // loop_footer
      %s20 = sadd.s32 1, %s16
    $region7: #{tpu_custom_call.1} parent=1 // loop_footer_branch
      %15 = sbr.rel target = $region3
    $region8: #{tpu_custom_call.1} parent=1 // loop_exit
      _
    %409 = vsyncpa [#allocation3], 1
    %s410 = scalar_lea.sflag [#allocation3], 1
    %411 = vsyncpa %s410, 1
    %412 = vsyncpa [#allocation4], 1
    %s413 = scalar_lea.sflag [#allocation4], 1
    %414 = vsyncpa %s413, 1

</llo_original>
